<compile_context>
chip_gen: v5e
topology: v5e:2x2
jax: 0.10.0
libtpu: 0.0.40
codegen_flags: <defaults>
</compile_context>

<pallas_src>
import jax
import jax.numpy as jnp
from jax.experimental import pallas as pl
from jax.experimental.pallas import tpu as pltpu

CIN = 12
COUT = 288
COUT_PAD = 384      # 3 * 128 lanes -> lane-dense, unmasked weight loads


def _conv1x1_m1_kernel(x_ref, w_ref, o_ref):
    """x_ref: SMEM (CIN,) f32 scalars.
    w_ref: VMEM (CIN + 1, COUT_PAD) f32; rows 0..CIN-1 = W^T, row CIN = bias.
    o_ref: VMEM (1, COUT) output (full-array block)."""
    # Initialise the accumulator with the bias row (bias folded into weights).
    acc = w_ref[pl.ds(CIN, 1), :]                       # (1, COUT_PAD) f32
    # Fully-unrolled VPU broadcast-FMA over the 12 input channels
    # (~36 vreg mul/adds; far cheaper than an MXU pass at this size).
    for c in range(CIN):
        acc = acc + x_ref[c] * w_ref[pl.ds(c, 1), :]
    # Single store of the valid 288 lanes (one masked vst on the last 32 lanes).
    o_ref[...] = acc[:, :COUT].astype(o_ref.dtype)


def prepare_conv1x1_params(weight_oi11, bias_o):
    """One-time (outside the hot path) layout prep:
    (Cout, Cin, 1, 1) weight + (Cout,) bias -> (Cin + 1, Cout_pad) augmented f32 matrix."""
    cout, cin = weight_oi11.shape[0], weight_oi11.shape[1]
    w_t = weight_oi11.reshape(cout, cin).T.astype(jnp.float32)      # (Cin, Cout)
    w_aug = jnp.zeros((cin + 1, COUT_PAD), dtype=jnp.float32)
    w_aug = w_aug.at[:cin, :cout].set(w_t)
    w_aug = w_aug.at[cin, :cout].set(bias_o.astype(jnp.float32))
    return w_aug


@jax.jit
def conv2d_1x1_m1(x_nchw, w_aug):
    """1x1 conv, stride 1, for x of shape (1, Cin, 1, 1). Returns (1, Cout, 1, 1)."""
    # H = W = N = 1 -> pure reshape, no transpose ops emitted.
    # Explicit f32: SMEM holds 32-bit scalars (and v5e has no bf16 VPU).
    x_vec = x_nchw.reshape(CIN).astype(jnp.float32)

    out = pl.pallas_call(
        _conv1x1_m1_kernel,
        out_shape=jax.ShapeDtypeStruct((1, COUT), x_nchw.dtype),
        in_specs=[
            # 12 input scalars go straight to SMEM (cheap scalar reads).
            pl.BlockSpec(memory_space=pltpu.MemorySpace.SMEM),
            # Augmented weight matrix, full-array block in VMEM.
            pl.BlockSpec((CIN + 1, COUT_PAD), lambda: (0, 0)),
        ],
        # Full-array output block -> (8,128) divisibility rule bypassed.
        out_specs=pl.BlockSpec((1, COUT), lambda: (0, 0)),
        cost_estimate=pl.CostEstimate(
            flops=2 * CIN * COUT,
            transcendentals=0,
            bytes_accessed=(CIN + 1) * COUT_PAD * 4 + CIN * 4 + COUT * 4,
        ),
    )(x_vec, w_aug)

    # (1, 288) -> NCHW (pure reshape).
    return out.reshape(1, COUT, 1, 1)


if __name__ == "__main__":
    key = jax.random.PRNGKey(0)
    k_x, k_w, k_b = jax.random.split(key, 3)

    N, Cin, H, W = 1, CIN, 1, 1
    Cout = COUT

    # Deterministic synthetic parameters (shapes follow nn.Conv2d(12, 288, 1)).
    x = jax.random.normal(k_x, (N, Cin, H, W), dtype=jnp.float32)
    weight = jax.random.normal(k_w, (Cout, Cin, 1, 1), dtype=jnp.float32) * 0.1
    bias = jax.random.normal(k_b, (Cout,), dtype=jnp.float32) * 0.1

    # One-time parameter layout prep (weights are static in the model).
    w_aug = jax.block_until_ready(prepare_conv1x1_params(weight, bias))

    out = conv2d_1x1_m1(x, w_aug)
    out = jax.block_until_ready(out)

    # Cross-check against plain-JAX reference.
    ref = (
        jnp.einsum("nchw,oc->nohw", x, weight.reshape(Cout, Cin))
        + bias.reshape(1, Cout, 1, 1)
    )
    assert out.shape == (N, Cout, H, W), out.shape
    assert jnp.allclose(out, ref, atol=1e-5, rtol=1e-5)

    print("KERNEL_OK")
</pallas_src>

<mosaic_0001>
module attributes {stable_mosaic.version = 11 : i64} {
  func.func @_conv1x1_m1_kernel(%arg0: memref<12xf32, #tpu.memory_space<smem>>, %arg1: memref<13x384xf32, #tpu.memory_space<vmem>>, %arg2: memref<1x288xf32, #tpu.memory_space<vmem>>) attributes {dimension_semantics = [], scalar_prefetch = 0 : i64, scratch_operands = 0 : i64, tpu.core_type = #tpu.core_type<tc>} {
    %c12 = arith.constant 12 : index
    %c0 = arith.constant 0 : index
    %0 = vector.load %arg1[%c12, %c0] : memref<13x384xf32, #tpu.memory_space<vmem>>, vector<1x384xf32>
    %c0_0 = arith.constant 0 : index
    %1 = memref.load %arg0[%c0_0] : memref<12xf32, #tpu.memory_space<smem>>
    %c0_1 = arith.constant 0 : index
    %c0_2 = arith.constant 0 : index
    %2 = vector.load %arg1[%c0_1, %c0_2] : memref<13x384xf32, #tpu.memory_space<vmem>>, vector<1x384xf32>
    %3 = vector.broadcast %1 : f32 to vector<1x384xf32>
    %4 = arith.mulf %3, %2 : vector<1x384xf32>
    %5 = arith.addf %0, %4 : vector<1x384xf32>
    %c1 = arith.constant 1 : index
    %6 = memref.load %arg0[%c1] : memref<12xf32, #tpu.memory_space<smem>>
    %c1_3 = arith.constant 1 : index
    %c0_4 = arith.constant 0 : index
    %7 = vector.load %arg1[%c1_3, %c0_4] : memref<13x384xf32, #tpu.memory_space<vmem>>, vector<1x384xf32>
    %8 = vector.broadcast %6 : f32 to vector<1x384xf32>
    %9 = arith.mulf %8, %7 : vector<1x384xf32>
    %10 = arith.addf %5, %9 : vector<1x384xf32>
    %c2 = arith.constant 2 : index
    %11 = memref.load %arg0[%c2] : memref<12xf32, #tpu.memory_space<smem>>
    %c2_5 = arith.constant 2 : index
    %c0_6 = arith.constant 0 : index
    %12 = vector.load %arg1[%c2_5, %c0_6] : memref<13x384xf32, #tpu.memory_space<vmem>>, vector<1x384xf32>
    %13 = vector.broadcast %11 : f32 to vector<1x384xf32>
    %14 = arith.mulf %13, %12 : vector<1x384xf32>
    %15 = arith.addf %10, %14 : vector<1x384xf32>
    %c3 = arith.constant 3 : index
    %16 = memref.load %arg0[%c3] : memref<12xf32, #tpu.memory_space<smem>>
    %c3_7 = arith.constant 3 : index
    %c0_8 = arith.constant 0 : index
    %17 = vector.load %arg1[%c3_7, %c0_8] : memref<13x384xf32, #tpu.memory_space<vmem>>, vector<1x384xf32>
    %18 = vector.broadcast %16 : f32 to vector<1x384xf32>
    %19 = arith.mulf %18, %17 : vector<1x384xf32>
    %20 = arith.addf %15, %19 : vector<1x384xf32>
    %c4 = arith.constant 4 : index
    %21 = memref.load %arg0[%c4] : memref<12xf32, #tpu.memory_space<smem>>
    %c4_9 = arith.constant 4 : index
    %c0_10 = arith.constant 0 : index
    %22 = vector.load %arg1[%c4_9, %c0_10] : memref<13x384xf32, #tpu.memory_space<vmem>>, vector<1x384xf32>
    %23 = vector.broadcast %21 : f32 to vector<1x384xf32>
    %24 = arith.mulf %23, %22 : vector<1x384xf32>
    %25 = arith.addf %20, %24 : vector<1x384xf32>
    %c5 = arith.constant 5 : index
    %26 = memref.load %arg0[%c5] : memref<12xf32, #tpu.memory_space<smem>>
    %c5_11 = arith.constant 5 : index
    %c0_12 = arith.constant 0 : index
    %27 = vector.load %arg1[%c5_11, %c0_12] : memref<13x384xf32, #tpu.memory_space<vmem>>, vector<1x384xf32>
    %28 = vector.broadcast %26 : f32 to vector<1x384xf32>
    %29 = arith.mulf %28, %27 : vector<1x384xf32>
    %30 = arith.addf %25, %29 : vector<1x384xf32>
    %c6 = arith.constant 6 : index
    %31 = memref.load %arg0[%c6] : memref<12xf32, #tpu.memory_space<smem>>
    %c6_13 = arith.constant 6 : index
    %c0_14 = arith.constant 0 : index
    %32 = vector.load %arg1[%c6_13, %c0_14] : memref<13x384xf32, #tpu.memory_space<vmem>>, vector<1x384xf32>
    %33 = vector.broadcast %31 : f32 to vector<1x384xf32>
    %34 = arith.mulf %33, %32 : vector<1x384xf32>
    %35 = arith.addf %30, %34 : vector<1x384xf32>
    %c7 = arith.constant 7 : index
    %36 = memref.load %arg0[%c7] : memref<12xf32, #tpu.memory_space<smem>>
    %c7_15 = arith.constant 7 : index
    %c0_16 = arith.constant 0 : index
    %37 = vector.load %arg1[%c7_15, %c0_16] : memref<13x384xf32, #tpu.memory_space<vmem>>, vector<1x384xf32>
    %38 = vector.broadcast %36 : f32 to vector<1x384xf32>
    %39 = arith.mulf %38, %37 : vector<1x384xf32>
    %40 = arith.addf %35, %39 : vector<1x384xf32>
    %c8 = arith.constant 8 : index
    %41 = memref.load %arg0[%c8] : memref<12xf32, #tpu.memory_space<smem>>
    %c8_17 = arith.constant 8 : index
    %c0_18 = arith.constant 0 : index
    %42 = vector.load %arg1[%c8_17, %c0_18] : memref<13x384xf32, #tpu.memory_space<vmem>>, vector<1x384xf32>
    %43 = vector.broadcast %41 : f32 to vector<1x384xf32>
    %44 = arith.mulf %43, %42 : vector<1x384xf32>
    %45 = arith.addf %40, %44 : vector<1x384xf32>
    %c9 = arith.constant 9 : index
    %46 = memref.load %arg0[%c9] : memref<12xf32, #tpu.memory_space<smem>>
    %c9_19 = arith.constant 9 : index
    %c0_20 = arith.constant 0 : index
    %47 = vector.load %arg1[%c9_19, %c0_20] : memref<13x384xf32, #tpu.memory_space<vmem>>, vector<1x384xf32>
    %48 = vector.broadcast %46 : f32 to vector<1x384xf32>
    %49 = arith.mulf %48, %47 : vector<1x384xf32>
    %50 = arith.addf %45, %49 : vector<1x384xf32>
    %c10 = arith.constant 10 : index
    %51 = memref.load %arg0[%c10] : memref<12xf32, #tpu.memory_space<smem>>
    %c10_21 = arith.constant 10 : index
    %c0_22 = arith.constant 0 : index
    %52 = vector.load %arg1[%c10_21, %c0_22] : memref<13x384xf32, #tpu.memory_space<vmem>>, vector<1x384xf32>
    %53 = vector.broadcast %51 : f32 to vector<1x384xf32>
    %54 = arith.mulf %53, %52 : vector<1x384xf32>
    %55 = arith.addf %50, %54 : vector<1x384xf32>
    %c11 = arith.constant 11 : index
    %56 = memref.load %arg0[%c11] : memref<12xf32, #tpu.memory_space<smem>>
    %c11_23 = arith.constant 11 : index
    %c0_24 = arith.constant 0 : index
    %57 = vector.load %arg1[%c11_23, %c0_24] : memref<13x384xf32, #tpu.memory_space<vmem>>, vector<1x384xf32>
    %58 = vector.broadcast %56 : f32 to vector<1x384xf32>
    %59 = arith.mulf %58, %57 : vector<1x384xf32>
    %60 = arith.addf %55, %59 : vector<1x384xf32>
    %61 = vector.extract_strided_slice %60 {offsets = [0, 0], sizes = [1, 288], strides = [1, 1]} : vector<1x384xf32> to vector<1x288xf32>
    %c0_25 = arith.constant 0 : index
    %c0_26 = arith.constant 0 : index
    %62 = vector.load %arg2[%c0_25, %c0_26] : memref<1x288xf32, #tpu.memory_space<vmem>>, vector<1x288xf32>
    tpu.vector_store %arg2[%c0_25, %c0_26], %61 {strides = array<i32>} : memref<1x288xf32, #tpu.memory_space<vmem>>, vector<1x288xf32>,
    return
  }
}

</mosaic_0001>

<llo_original>
// kernel: conv2d_1x1_m1.1
$region0: #{conv2d_1x1_m1.1}
  #allocation0 [shape = 'u32[]', space=smem, size = 0x4, offset = 0x4, fixed_abs, tag = 'smem constant byte address 0x4 - core index']
  #allocation1 [shape = 'u32[72,128]{1,0:T(1,128)}', space=vmem, size = 0x9000, scoped, tag = 'internal scratch']
  %s0 = inlined_call_operand.hbm [shape: f32[12], index: 0, kind: input, shape index: {}]
  %s1 = inlined_call_operand.hbm [shape: f32[13,384], index: 1, kind: input, shape index: {}]
  %s2 = inlined_call_operand.hbm [shape: f32[1,288], index: 2, kind: output, shape index: {}]
  %s3 = sld [smem:[#allocation0]]
  $region26: #{conv2d_1x1_m1.1} parent=0
    _
  %s5 = ssub.s32 1, %s3
  %s6 = scalar_select 0, %s5, %s3
  $region1: #{conv2d_1x1_m1.1} parent=0
    #allocation2 [shape = 'u8[512]{0}', space=smem, size = 0x200, scoped, tag = 'input window, operand 0, single buffered']
    #allocation3 [shape = 's32[1]{0}', space=sflag, size = 0x4, scoped, tag = 'scoped memory for conv2d_1x1_m1.1']
    #allocation4 [shape = 's32[1]{0}', space=sflag, size = 0x4, scoped, tag = 'scoped memory for conv2d_1x1_m1.1']
    #allocation5 [shape = 's32[1]{0}', space=sflag, size = 0x4, scoped, tag = 'scoped memory for conv2d_1x1_m1.1']
    #allocation6 [shape = 'u8[24576]{0}', space=vmem, size = 0x6000, scoped, tag = 'input window, operand 1, single buffered']
    #allocation7 [shape = 'u8[1536]{0}', space=vmem, size = 0x800, scoped, tag = 'output window, operand 0, single buffered']
    %7 = vsyncpa [#allocation5], 0
    %8 = vsyncpa [#allocation3], 0
    %9 = vsyncpa [#allocation4], 0
    // Predicated region
    $region2: #{conv2d_1x1_m1.1} parent=1 // pred_check
      _
    $region3: #{conv2d_1x1_m1.1} parent=1 // pred_check_branch
      %11 = sbr.rel (0) target = $region5
    $region4: #{conv2d_1x1_m1.1} parent=1 // pred_region
      %13 = vsyncadd [#allocation5], 0
      %s15 = sshll.u32 %s0, 4
      %s16 = int_to_ptr.hbm [resolvable:$true] %s15
      %18 = dma.hbm_to_smem %s16, 16, [#allocation2], [#allocation5]
    $region5: #{conv2d_1x1_m1.1} parent=1 // pred_fallthru
      _
    // Predicated region
    $region6: #{conv2d_1x1_m1.1} parent=1 // pred_check
      _
    $region7: #{conv2d_1x1_m1.1} parent=1 // pred_check_branch
      %20 = sbr.rel (0) target = $region9
    $region8: #{conv2d_1x1_m1.1} parent=1 // pred_region
      %22 = vsyncadd [#allocation3], 0
      %s23 = sshll.u32 %s1, 4
      %s24 = int_to_ptr.hbm [resolvable:$true] %s23
      %s25 = sshll.u32 [#allocation6], 4
      %s26 = int_to_ptr.vmem [resolvable:$true] %s25
      %31 = dma.hbm_to_vmem [thread:$0]  %s24, 768, %s26, [#allocation3], 384, 384, 24
    $region9: #{conv2d_1x1_m1.1} parent=1 // pred_fallthru
      _
    // Predicated region
    $region10: #{conv2d_1x1_m1.1} parent=1 // pred_check
      _
    $region11: #{conv2d_1x1_m1.1} parent=1 // pred_check_branch
      %33 = sbr.rel (0) target = $region13
    $region12: #{conv2d_1x1_m1.1} parent=1 // pred_region
      %35 = dma.done [#allocation5], 16
    $region13: #{conv2d_1x1_m1.1} parent=1 // pred_fallthru
      _
    // Predicated region
    $region14: #{conv2d_1x1_m1.1} parent=1 // pred_check
      _
    $region15: #{conv2d_1x1_m1.1} parent=1 // pred_check_branch
      %37 = sbr.rel (0) target = $region17
    $region16: #{conv2d_1x1_m1.1} parent=1 // pred_region
      %39 = dma.done [#allocation3], 768
    $region17: #{conv2d_1x1_m1.1} parent=1 // pred_fallthru
      _
    %40 = sfence
    %s41 = scalar_lea.vmem [#allocation6], 28
    %v42 = vld [vmem:[%s41] ss:$8 sm:$0x7]
    %s43 = sld [smem:[#allocation2]]
    %v44 = vld [vmem:[#allocation6] ss:$8 sm:$0x7]
    %v45 = vstv %s43
    %v46 = vmul.f32 %v45, %v44
    %v47 = vadd.f32 %v42, %v46
    %s48 = sld [smem:[#allocation2 + $0x1]]
    %s49 = scalar_lea.vmem [#allocation6], 1
    %v50 = vld [vmem:[%s49] ss:$8 sm:$0x7]
    %v51 = vstv %s48
    %v52 = vmul.f32 %v51, %v50
    %v53 = vadd.f32 %v47, %v52
    %s54 = sld [smem:[#allocation2 + $0x2]]
    %s55 = scalar_lea.vmem [#allocation6], 2
    %v56 = vld [vmem:[%s55] ss:$8 sm:$0x7]
    %v57 = vstv %s54
    %v58 = vmul.f32 %v57, %v56
    %v59 = vadd.f32 %v53, %v58
    %s60 = sld [smem:[#allocation2 + $0x3]]
    %s61 = scalar_lea.vmem [#allocation6], 3
    %v62 = vld [vmem:[%s61] ss:$8 sm:$0x7]
    %v63 = vstv %s60
    %v64 = vmul.f32 %v63, %v62
    %v65 = vadd.f32 %v59, %v64
    %s66 = sld [smem:[#allocation2 + $0x4]]
    %s67 = scalar_lea.vmem [#allocation6], 4
    %v68 = vld [vmem:[%s67] ss:$8 sm:$0x7]
    %v69 = vstv %s66
    %v70 = vmul.f32 %v69, %v68
    %v71 = vadd.f32 %v65, %v70
    %s72 = sld [smem:[#allocation2 + $0x5]]
    %s73 = scalar_lea.vmem [#allocation6], 5
    %v74 = vld [vmem:[%s73] ss:$8 sm:$0x7]
    %v75 = vstv %s72
    %v76 = vmul.f32 %v75, %v74
    %v77 = vadd.f32 %v71, %v76
    %s78 = sld [smem:[#allocation2 + $0x6]]
    %s79 = scalar_lea.vmem [#allocation6], 6
    %v80 = vld [vmem:[%s79] ss:$8 sm:$0x7]
    %v81 = vstv %s78
    %v82 = vmul.f32 %v81, %v80
    %v83 = vadd.f32 %v77, %v82
    %s84 = sld [smem:[#allocation2 + $0x7]]
    %s85 = scalar_lea.vmem [#allocation6], 7
    %v86 = vld [vmem:[%s85] ss:$8 sm:$0x7]
    %v87 = vstv %s84
    %v88 = vmul.f32 %v87, %v86
    %v89 = vadd.f32 %v83, %v88
    %s90 = sld [smem:[#allocation2 + $0x8]]
    %s91 = scalar_lea.vmem [#allocation6], 24
    %v92 = vld [vmem:[%s91] ss:$8 sm:$0x7]
    %v93 = vstv %s90
    %v94 = vmul.f32 %v93, %v92
    %v95 = vadd.f32 %v89, %v94
    %s96 = sld [smem:[#allocation2 + $0x9]]
    %s97 = scalar_lea.vmem [#allocation6], 25
    %v98 = vld [vmem:[%s97] ss:$8 sm:$0x7]
    %v99 = vstv %s96
    %v100 = vmul.f32 %v99, %v98
    %v101 = vadd.f32 %v95, %v100
    %s102 = sld [smem:[#allocation2 + $0xa]]
    %s103 = scalar_lea.vmem [#allocation6], 26
    %v104 = vld [vmem:[%s103] ss:$8 sm:$0x7]
    %v105 = vstv %s102
    %v106 = vmul.f32 %v105, %v104
    %v107 = vadd.f32 %v101, %v106
    %s108 = sld [smem:[#allocation2 + $0xb]]
    %s109 = scalar_lea.vmem [#allocation6], 27
    %v110 = vld [vmem:[%s109] ss:$8 sm:$0x7]
    %v111 = vstv %s108
    %v112 = vmul.f32 %v111, %v110
    %v113 = vadd.f32 %v107, %v112
    %v114 = vlaneseq
    %vm115 = vcmp.ge.s32.totalorder %v114, 0
    %vm116 = vcmp.lt.s32.totalorder %v114, 288
    %vm117 = vmand %vm115, %vm116
    %118 = vst.msk [vmem:[#allocation7] sm:$0x7] %vm117, %v113
    // Predicated region
    $region18: #{conv2d_1x1_m1.1} parent=1 // pred_check
      _
    $region19: #{conv2d_1x1_m1.1} parent=1 // pred_check_branch
      %120 = sbr.rel (0) target = $region21
    $region20: #{conv2d_1x1_m1.1} parent=1 // pred_region
      %122 = vsyncadd [#allocation4], 0
      %s124 = sshll.u32 [#allocation7], 4
      %s125 = int_to_ptr.vmem [resolvable:$true] %s124
      %s126 = sshll.u32 %s2, 4
      %s127 = int_to_ptr.hbm [resolvable:$true] %s126
      %129 = dma.vmem_to_hbm [thread:$0]  %s125, 48, %s127, [#allocation4]
    $region21: #{conv2d_1x1_m1.1} parent=1 // pred_fallthru
      _
    // Predicated region
    $region22: #{conv2d_1x1_m1.1} parent=1 // pred_check
      _
    $region23: #{conv2d_1x1_m1.1} parent=1 // pred_check_branch
      %131 = sbr.rel (0) target = $region25
    $region24: #{conv2d_1x1_m1.1} parent=1 // pred_region
      %133 = dma.done [#allocation4], 48
    $region25: #{conv2d_1x1_m1.1} parent=1 // pred_fallthru
      _
    %134 = vsyncpa [#allocation3], 1
    %135 = vsyncpa [#allocation4], 1
    %136 = vsyncpa [#allocation5], 1

</llo_original>
